<compile_context>
chip_gen: v7x
topology: tpu7x:2x2x1
jax: 0.10.0
libtpu: 0.0.40
codegen_flags: <defaults>
</compile_context>

<pallas_src>
import math

import jax
import jax.numpy as jnp
from jax.experimental import pallas as pl
from jax.experimental.pallas import tpu as pltpu


def _round_up(x, m):
    return ((x + m - 1) // m) * m


def _soft_q_kernel(sa_ref, w1_ref, w2_ref, w3_ref, bias_ref, out_ref):
    """Fused twin-head MLP.

    sa_ref  : (bm, d_in)        f32   state||action tile
    w1_ref  : (d_in, 2Hp)       mxu_dtype  [w1_q1 | w1_q2] (lane-padded)
    w2_ref  : (2Hp, 2Hp)        mxu_dtype  block-diag(w2_q1, w2_q2)
    w3_ref  : (2Hp, 2)          mxu_dtype  block-diag(w3_q1, w3_q2)
    bias_ref: (3, 2Hp)          f32   row0=b1, row1=b2, row2=[b3_q1, b3_q2, 0..]
    out_ref : (bm, 2)           f32   column 0 = q1, column 1 = q2
    """
    wdt = w1_ref.dtype  # weights pre-cast at pack time (bf16 by default)

    b1 = bias_ref[0:1, :]       # (1, 2Hp)
    b2 = bias_ref[1:2, :]       # (1, 2Hp)
    b3 = bias_ref[2:3, :2]      # (1, 2)

    # Layer 1: single MXU pass over the pre-concatenated state||action.
    x = sa_ref[...].astype(wdt)
    h = jnp.dot(x, w1_ref[...], preferred_element_type=jnp.float32) + b1
    h = jnp.maximum(h, 0.0)                                   # f32 on VPU
    # Layer 2: one block-diagonal pass covers both heads.
    h = jnp.dot(h.astype(wdt), w2_ref[...],
                preferred_element_type=jnp.float32) + b2
    h = jnp.maximum(h, 0.0)
    # Layer 3: one (2Hp, 2) pass produces both q-values lane-dense.
    q = jnp.dot(h.astype(wdt), w3_ref[...],
                preferred_element_type=jnp.float32) + b3
    out_ref[...] = q.astype(out_ref.dtype)


def pack_soft_q_params(params, *, mxu_dtype=jnp.bfloat16):
    """Pack per-head params into 4 fused slabs (done ONCE, not per call).

    Weights are pre-cast to mxu_dtype; biases stay f32. Hidden width is padded
    per head to a multiple of 64 so the fused width is a multiple of 128 lanes.
    Bias inputs may be shaped (out,) or (1, out) (PyTorch import friendly).
    """
    w1a, b1a, w2a, b2a, w3a, b3a = params["q1"]
    w1b, b1b, w2b, b2b, w3b, b3b = params["q2"]
    f32 = jnp.float32
    H = jnp.asarray(w2a).shape[0]
    Hp = _round_up(H, 64)                      # 2*Hp is a multiple of 128

    def pad2(w, rows, cols):
        w = jnp.asarray(w, f32)
        return jnp.pad(w, ((0, rows - w.shape[0]), (0, cols - w.shape[1])))

    def row(b, cols):
        b = jnp.asarray(b, f32).reshape(1, -1)
        return jnp.pad(b, ((0, 0), (0, cols - b.shape[1])))

    d_in = jnp.asarray(w1a).shape[0]

    w1 = jnp.concatenate([pad2(w1a, d_in, Hp), pad2(w1b, d_in, Hp)], axis=1)
    zHH = jnp.zeros((Hp, Hp), f32)
    w2 = jnp.block([[pad2(w2a, Hp, Hp), zHH], [zHH, pad2(w2b, Hp, Hp)]])
    zH1 = jnp.zeros((Hp, 1), f32)
    w3 = jnp.block([[pad2(jnp.asarray(w3a, f32).reshape(H, 1), Hp, 1), zH1],
                    [zH1, pad2(jnp.asarray(w3b, f32).reshape(H, 1), Hp, 1)]])

    b1 = jnp.concatenate([row(b1a, Hp), row(b1b, Hp)], axis=1)     # (1, 2Hp)
    b2 = jnp.concatenate([row(b2a, Hp), row(b2b, Hp)], axis=1)     # (1, 2Hp)
    b3_pair = jnp.concatenate([jnp.asarray(b3a, f32).reshape(1, 1),
                               jnp.asarray(b3b, f32).reshape(1, 1)], axis=1)
    b3 = row(b3_pair, 2 * Hp)                                      # (1, 2Hp)
    biases = jnp.concatenate([b1, b2, b3], axis=0)                 # (3, 2Hp)

    return {"w1": w1.astype(mxu_dtype), "w2": w2.astype(mxu_dtype),
            "w3": w3.astype(mxu_dtype), "biases": biases}


def soft_q_forward(state, action, packed, *, block_b=4096):
    """Returns (q1, q2), each (B, 1) float32, matching the PyTorch module."""
    B = state.shape[0]
    w1, w2, w3, biases = packed["w1"], packed["w2"], packed["w3"], packed["biases"]
    d_in, H2 = w1.shape
    assert state.shape[1] + action.shape[1] == d_in

    # Concatenate once in the wrapper -> single K=d_in MXU pass in the kernel.
    sa = jnp.concatenate([state.astype(jnp.float32),
                          action.astype(jnp.float32)], axis=1)

    # Batch tile: large tiles amortize per-step overhead; cap at ~B/2 (rounded
    # to the 8-sublane granule) so v7x gets >= 2 parallel grid steps.
    if B <= 8:
        bm = B
    else:
        bm = min(block_b, _round_up(pl.cdiv(B, 2), 8))
    grid = (pl.cdiv(B, bm),)

    wbytes = (w1.size * w1.dtype.itemsize + w2.size * w2.dtype.itemsize
              + w3.size * w3.dtype.itemsize + biases.size * 4)
    cost = pl.CostEstimate(
        flops=2 * B * (d_in * H2 + H2 * H2 + H2 * 2),
        transcendentals=0,
        bytes_accessed=B * (4 * d_in + 2 * 4) + wbytes)

    out = pl.pallas_call(
        _soft_q_kernel,
        out_shape=jax.ShapeDtypeStruct((B, 2), jnp.float32),
        grid=grid,
        in_specs=[
            pl.BlockSpec((bm, d_in), lambda i: (i, 0)),    # state||action tile
            pl.BlockSpec((d_in, H2), lambda i: (0, 0)),    # w1 slab (resident)
            pl.BlockSpec((H2, H2), lambda i: (0, 0)),      # w2 slab (resident)
            pl.BlockSpec((H2, 2), lambda i: (0, 0)),       # w3 slab (resident)
            pl.BlockSpec((3, H2), lambda i: (0, 0)),       # bias slab (resident)
        ],
        out_specs=pl.BlockSpec((bm, 2), lambda i: (i, 0)),  # lane-narrow (B, 2)
        compiler_params=pltpu.CompilerParams(
            dimension_semantics=("parallel",)),
        cost_estimate=cost,
    )(sa, w1, w2, w3, biases)

    return out[:, 0:1], out[:, 1:2]


def init_linear(key, fan_in, fan_out):
    """PyTorch-style nn.Linear init: U(-1/sqrt(fan_in), 1/sqrt(fan_in))."""
    kw, kb = jax.random.split(key)
    bound = 1.0 / math.sqrt(fan_in)
    w = jax.random.uniform(kw, (fan_in, fan_out), jnp.float32, -bound, bound)
    b = jax.random.uniform(kb, (1, fan_out), jnp.float32, -bound, bound)
    return w, b


def init_soft_q_params(key, num_inputs, num_actions, hidden_size):
    d_in = num_inputs + num_actions
    keys = jax.random.split(key, 6)
    q1 = (*init_linear(keys[0], d_in, hidden_size),
          *init_linear(keys[1], hidden_size, hidden_size),
          *init_linear(keys[2], hidden_size, 1))
    q2 = (*init_linear(keys[3], d_in, hidden_size),
          *init_linear(keys[4], hidden_size, hidden_size),
          *init_linear(keys[5], hidden_size, 1))
    return {"q1": q1, "q2": q2}


if __name__ == "__main__":
    num_inputs, num_actions, hidden_size = 8, 4, 32
    batch = 2

    root = jax.random.PRNGKey(0)
    k_params, k_state, k_action, k_big = jax.random.split(root, 4)

    params = init_soft_q_params(k_params, num_inputs, num_actions, hidden_size)
    packed = pack_soft_q_params(params)            # bf16 MXU slabs, f32 biases

    state = jax.random.normal(k_state, (batch, num_inputs), jnp.float32)
    action = jax.random.normal(k_action, (batch, num_actions), jnp.float32)

    q1, q2 = soft_q_forward(state, action, packed)
    jax.block_until_ready((q1, q2))
    assert q1.shape == (batch, 1) and q2.shape == (batch, 1)

    # --- references -------------------------------------------------------
    def ref_mlp_f32(x, p):
        w1, b1, w2, b2, w3, b3 = p
        h = jnp.maximum(x @ w1 + b1, 0.0)
        h = jnp.maximum(h @ w2 + b2, 0.0)
        return h @ w3 + b3

    def ref_mlp_bf16(sa, p):
        # Mirrors kernel numerics: bf16 MXU operands, f32 accumulation,
        # single fused layer-1 dot, f32 bias/ReLU.
        w1, b1, w2, b2, w3, b3 = p

        def d(x, w):
            return jnp.dot(x.astype(jnp.bfloat16), w.astype(jnp.bfloat16),
                           preferred_element_type=jnp.float32)

        h = jnp.maximum(d(sa, w1) + b1, 0.0)
        h = jnp.maximum(d(h, w2) + b2, 0.0)
        return d(h, w3) + b3

    sa = jnp.concatenate([state, action], axis=1)

    # Tight check against the bf16-matched reference (same math as kernel).
    r1b = ref_mlp_bf16(sa, params["q1"])
    r2b = ref_mlp_bf16(sa, params["q2"])
    assert jnp.allclose(q1, r1b, atol=1e-4), (q1, r1b)
    assert jnp.allclose(q2, r2b, atol=1e-4), (q2, r2b)

    # Coarse check against the exact-f32 PyTorch-equivalent math.
    # TODO(synk): pass mxu_dtype=jnp.float32 to pack_soft_q_params if
    # bit-faithful f32 Q-values are required (e.g. target-network comparisons).
    r1f = ref_mlp_f32(sa, params["q1"])
    r2f = ref_mlp_f32(sa, params["q2"])
    assert jnp.allclose(q1, r1f, atol=5e-2) and jnp.allclose(q2, r2f, atol=5e-2)

    # Exercise the multi-step parallel grid path (2 steps -> v7x megacore).
    B2 = 4096
    kbs, kba = jax.random.split(k_big)
    big_state = jax.random.normal(kbs, (B2, num_inputs), jnp.float32)
    big_action = jax.random.normal(kba, (B2, num_actions), jnp.float32)
    bq1, bq2 = soft_q_forward(big_state, big_action, packed)
    jax.block_until_ready((bq1, bq2))
    big_sa = jnp.concatenate([big_state, big_action], axis=1)
    br1 = ref_mlp_bf16(big_sa, params["q1"])
    br2 = ref_mlp_bf16(big_sa, params["q2"])
    assert jnp.allclose(bq1, br1, atol=1e-4) and jnp.allclose(bq2, br2, atol=1e-4)

    print("KERNEL_OK")
</pallas_src>

<mosaic_0001>
module attributes {stable_mosaic.version = 11 : i64} {
  func.func @_soft_q_kernel(%arg0: i32, %arg1: memref<2x12xf32, #tpu.memory_space<vmem>>, %arg2: memref<12x128xbf16, #tpu.memory_space<vmem>>, %arg3: memref<128x128xbf16, #tpu.memory_space<vmem>>, %arg4: memref<128x2xbf16, #tpu.memory_space<vmem>>, %arg5: memref<3x128xf32, #tpu.memory_space<vmem>>, %arg6: memref<2x2xf32, #tpu.memory_space<vmem>>) attributes {dimension_semantics = [#tpu.dimension_semantics<parallel>], iteration_bounds = array<i64: 1>, scalar_prefetch = 0 : i64, scratch_operands = 0 : i64, tpu.core_type = #tpu.core_type<tc>, window_params = [{transform_indices = @transform_0, window_bounds = array<i64: 2, 12>}, {pipeline_mode = #tpu.pipeline_mode<synchronous>, transform_indices = @transform_1, window_bounds = array<i64: 12, 128>}, {pipeline_mode = #tpu.pipeline_mode<synchronous>, transform_indices = @transform_2, window_bounds = array<i64: 128, 128>}, {pipeline_mode = #tpu.pipeline_mode<synchronous>, transform_indices = @transform_3, window_bounds = array<i64: 128, 2>}, {pipeline_mode = #tpu.pipeline_mode<synchronous>, transform_indices = @transform_4, window_bounds = array<i64: 3, 128>}, {transform_indices = @transform_5, window_bounds = array<i64: 2, 2>}]} {
    %c0 = arith.constant 0 : index
    %c0_0 = arith.constant 0 : index
    %0 = vector.load %arg5[%c0, %c0_0] : memref<3x128xf32, #tpu.memory_space<vmem>>, vector<1x128xf32>
    %c1 = arith.constant 1 : index
    %c0_1 = arith.constant 0 : index
    %1 = vector.load %arg5[%c1, %c0_1] : memref<3x128xf32, #tpu.memory_space<vmem>>, vector<1x128xf32>
    %c2 = arith.constant 2 : index
    %c0_2 = arith.constant 0 : index
    %2 = vector.load %arg5[%c2, %c0_2] : memref<3x128xf32, #tpu.memory_space<vmem>>, vector<1x2xf32>
    %c0_3 = arith.constant 0 : index
    %c0_4 = arith.constant 0 : index
    %3 = vector.load %arg1[%c0_3, %c0_4] : memref<2x12xf32, #tpu.memory_space<vmem>>, vector<2x12xf32>
    %4 = arith.truncf %3 : vector<2x12xf32> to vector<2x12xbf16>
    %c0_5 = arith.constant 0 : index
    %c0_6 = arith.constant 0 : index
    %5 = vector.load %arg2[%c0_5, %c0_6] : memref<12x128xbf16, #tpu.memory_space<vmem>>, vector<12x128xbf16>
    %cst = arith.constant dense<0.000000e+00> : vector<2x128xf32>
    %6 = tpu.matmul %4, %5, %cst {dimension_numbers = #tpu.dot_dimension_numbers<[1], [0], [0], [1], [0, 0, 1, 1], [], []>} : vector<2x12xbf16>, vector<12x128xbf16>, vector<2x128xf32> -> vector<2x128xf32>
    %7 = vector.broadcast %0 : vector<1x128xf32> to vector<2x128xf32>
    %8 = arith.addf %6, %7 : vector<2x128xf32>
    %cst_7 = arith.constant 0.000000e+00 : f32
    %9 = vector.broadcast %cst_7 : f32 to vector<2x128xf32>
    %10 = arith.maximumf %8, %9 : vector<2x128xf32>
    %11 = arith.truncf %10 : vector<2x128xf32> to vector<2x128xbf16>
    %c0_8 = arith.constant 0 : index
    %c0_9 = arith.constant 0 : index
    %12 = vector.load %arg3[%c0_8, %c0_9] : memref<128x128xbf16, #tpu.memory_space<vmem>>, vector<128x128xbf16>
    %cst_10 = arith.constant dense<0.000000e+00> : vector<2x128xf32>
    %13 = tpu.matmul %11, %12, %cst_10 {dimension_numbers = #tpu.dot_dimension_numbers<[1], [0], [0], [1], [0, 0, 1, 1], [], []>} : vector<2x128xbf16>, vector<128x128xbf16>, vector<2x128xf32> -> vector<2x128xf32>
    %14 = vector.broadcast %1 : vector<1x128xf32> to vector<2x128xf32>
    %15 = arith.addf %13, %14 : vector<2x128xf32>
    %cst_11 = arith.constant 0.000000e+00 : f32
    %16 = vector.broadcast %cst_11 : f32 to vector<2x128xf32>
    %17 = arith.maximumf %15, %16 : vector<2x128xf32>
    %18 = arith.truncf %17 : vector<2x128xf32> to vector<2x128xbf16>
    %c0_12 = arith.constant 0 : index
    %c0_13 = arith.constant 0 : index
    %19 = vector.load %arg4[%c0_12, %c0_13] : memref<128x2xbf16, #tpu.memory_space<vmem>>, vector<128x2xbf16>
    %cst_14 = arith.constant dense<0.000000e+00> : vector<2x2xf32>
    %20 = tpu.matmul %18, %19, %cst_14 {dimension_numbers = #tpu.dot_dimension_numbers<[1], [0], [0], [1], [0, 0, 1, 1], [], []>} : vector<2x128xbf16>, vector<128x2xbf16>, vector<2x2xf32> -> vector<2x2xf32>
    %21 = vector.broadcast %2 : vector<1x2xf32> to vector<2x2xf32>
    %22 = arith.addf %20, %21 : vector<2x2xf32>
    %c0_15 = arith.constant 0 : index
    %c0_16 = arith.constant 0 : index
    %23 = vector.load %arg6[%c0_15, %c0_16] : memref<2x2xf32, #tpu.memory_space<vmem>>, vector<2x2xf32>
    tpu.vector_store %arg6[%c0_15, %c0_16], %22 {strides = array<i32>} : memref<2x2xf32, #tpu.memory_space<vmem>>, vector<2x2xf32>,
    return
  }
  func.func @transform_0(%arg0: i32) -> (i32, i32) {
    %c0_i32 = arith.constant 0 : i32
    %c0_i32_0 = arith.constant 0 : i32
    return %arg0, %c0_i32 : i32, i32
  }
  func.func @transform_1(%arg0: i32) -> (i32, i32) {
    %c0_i32 = arith.constant 0 : i32
    %c0_i32_0 = arith.constant 0 : i32
    %c0_i32_1 = arith.constant 0 : i32
    return %c0_i32, %c0_i32_0 : i32, i32
  }
  func.func @transform_2(%arg0: i32) -> (i32, i32) {
    %c0_i32 = arith.constant 0 : i32
    %c0_i32_0 = arith.constant 0 : i32
    %c0_i32_1 = arith.constant 0 : i32
    return %c0_i32, %c0_i32_0 : i32, i32
  }
  func.func @transform_3(%arg0: i32) -> (i32, i32) {
    %c0_i32 = arith.constant 0 : i32
    %c0_i32_0 = arith.constant 0 : i32
    %c0_i32_1 = arith.constant 0 : i32
    return %c0_i32, %c0_i32_0 : i32, i32
  }
  func.func @transform_4(%arg0: i32) -> (i32, i32) {
    %c0_i32 = arith.constant 0 : i32
    %c0_i32_0 = arith.constant 0 : i32
    %c0_i32_1 = arith.constant 0 : i32
    return %c0_i32, %c0_i32_0 : i32, i32
  }
  func.func @transform_5(%arg0: i32) -> (i32, i32) {
    %c0_i32 = arith.constant 0 : i32
    %c0_i32_0 = arith.constant 0 : i32
    return %arg0, %c0_i32 : i32, i32
  }
}

</mosaic_0001>

<llo_original>
// kernel: tpu_custom_call.1
$region0: #{tpu_custom_call.1}
  #allocation0 [shape = 'u32[]', space=smem, size = 0x4, offset = 0x4, fixed_abs, tag = 'smem constant byte address 0x4 - core index']
  #allocation1 [shape = 'u32[144,128]{1,0:T(1,128)}', space=vmem, size = 0x12000, scoped, tag = 'internal scratch']
  %s0 = inlined_call_operand.hbm [shape: f32[2,12], index: 0, kind: input, shape index: {}]
  %s1 = inlined_call_operand.vmem [shape: bf16[12,128], index: 1, kind: input, shape index: {}]
  %s2 = inlined_call_operand.vmem [shape: bf16[128,128], index: 2, kind: input, shape index: {}]
  %s3 = inlined_call_operand.vmem [shape: bf16[128,2], index: 3, kind: input, shape index: {}]
  %s4 = inlined_call_operand.vmem [shape: f32[3,128], index: 4, kind: input, shape index: {}]
  %s5 = inlined_call_operand.hbm [shape: f32[2,2], index: 5, kind: output, shape index: {}]
  %s6 = sld [smem:[#allocation0]]
  $region34: #{tpu_custom_call.1} parent=0
    _
  %s8 = ssub.s32 1, %s6
  %s9 = scalar_select 0, %s8, %s6
  $region1: #{tpu_custom_call.1} parent=0
    #allocation2 [shape = 'u8[1024]{0}', space=vmem, size = 0x400, scoped, tag = 'input window, operand 0, single buffered']
    #allocation3 [shape = 's32[1]{0}', space=sflag, size = 0x4, scoped, tag = 'scoped memory for tpu_custom_call.1']
    #allocation4 [shape = 's32[1]{0}', space=sflag, size = 0x4, scoped, tag = 'scoped memory for tpu_custom_call.1']
    #allocation5 [shape = 'u8[1024]{0}', space=vmem, size = 0x400, scoped, tag = 'output window, operand 0, single buffered']
    %10 = vsyncpa [#allocation3], 0
    %11 = vsyncpa [#allocation4], 0
    // Predicated region
    $region2: #{tpu_custom_call.1} parent=1 // pred_check
      _
    $region3: #{tpu_custom_call.1} parent=1 // pred_check_branch
      %13 = sbr.rel (0) target = $region5
    $region4: #{tpu_custom_call.1} parent=1 // pred_region
      %s15 = ssub.s32 32, 32
      %16 = vsyncadd [#allocation3], %s15
      %s18 = sshll.u32 [#allocation2], 4
      %s19 = int_to_ptr.vmem [resolvable:$true] %s18
      %21 = dma.hbm_to_vmem [thread:$0]  %s0, 32, %s19, [#allocation3]
    $region5: #{tpu_custom_call.1} parent=1 // pred_fallthru
      _
    // Predicated region
    $region6: #{tpu_custom_call.1} parent=1 // pred_check
      _
    $region7: #{tpu_custom_call.1} parent=1 // pred_check_branch
      %23 = sbr.rel (0) target = $region9
    $region8: #{tpu_custom_call.1} parent=1 // pred_region
      _
    $region9: #{tpu_custom_call.1} parent=1 // pred_fallthru
      _
    // Predicated region
    $region10: #{tpu_custom_call.1} parent=1 // pred_check
      _
    $region11: #{tpu_custom_call.1} parent=1 // pred_check_branch
      %25 = sbr.rel (0) target = $region13
    $region12: #{tpu_custom_call.1} parent=1 // pred_region
      _
    $region13: #{tpu_custom_call.1} parent=1 // pred_fallthru
      _
    // Predicated region
    $region14: #{tpu_custom_call.1} parent=1 // pred_check
      _
    $region15: #{tpu_custom_call.1} parent=1 // pred_check_branch
      %27 = sbr.rel (0) target = $region17
    $region16: #{tpu_custom_call.1} parent=1 // pred_region
      _
    $region17: #{tpu_custom_call.1} parent=1 // pred_fallthru
      _
    // Predicated region
    $region18: #{tpu_custom_call.1} parent=1 // pred_check
      _
    $region19: #{tpu_custom_call.1} parent=1 // pred_check_branch
      %29 = sbr.rel (0) target = $region21
    $region20: #{tpu_custom_call.1} parent=1 // pred_region
      _
    $region21: #{tpu_custom_call.1} parent=1 // pred_fallthru
      _
    // Predicated region
    $region22: #{tpu_custom_call.1} parent=1 // pred_check
      _
    $region23: #{tpu_custom_call.1} parent=1 // pred_check_branch
      %31 = sbr.rel (0) target = $region25
    $region24: #{tpu_custom_call.1} parent=1 // pred_region
      %32 = dma.done [#allocation3], 32
    $region25: #{tpu_custom_call.1} parent=1 // pred_fallthru
      _
    %v34 = vld [vmem:[%s4] sm:$0x1]
    %v35 = vld [vmem:[%s4 + $0x1] sm:$0x1]
    %v36 = vld [vmem:[%s4 + $0x2] sm:$0x1]
    %v37 = vld [vmem:[#allocation2] sm:$0x3]
    %v38 = vpack.c.bf16 %v37, %v37
    %v39 = vld [vmem:[%s1] sm:$0xf]
    %v40 = vld [vmem:[%s1 + $0x4] sm:$0x3]
    %v41 = vlaneseq
    %v42 = vshrl.u32 %v41, 7
    %v43 = vsub.s32 0, %v42
    %v44 = vrot.slane %v34, %v43
    %v47 = vunpack.c.l.b16 %v39
    %v48 = vunpack.c.l.b16 %v40
    %v49 = vpack.c.b16 %v48, %v47
    %vm50 = vcmask 97280
    %v52 = vsel %vm50, %v38, 0
    %vm54 = vcmask 1045504
    %v56 = vsel %vm54, %v49, 0
    %58 = vmatprep.subr.bf16.mxu0 0
    %59 = vmatpush1.bf16.msra.mxu0 %v56
    %60 = vmatprep.subr.bf16.mxu0 0
    %61 = vmatpush1.bf16.msra.mxu0 0
    %62 = vmatprep.subr.bf16.mxu0 0
    %63 = vmatpush1.bf16.msra.mxu0 0
    %64 = vmatprep.subr.bf16.mxu0 0
    %65 = vmatpush1.bf16.msra.mxu0 0
    %66 = vmatprep.subr.bf16.mxu0 0
    %67 = vmatpush1.bf16.msra.mxu0 0
    %68 = vmatprep.subr.bf16.mxu0 0
    %69 = vmatpush1.bf16.msra.mxu0 0
    %70 = vmatprep.subr.bf16.mxu0 0
    %71 = vmatpush1.bf16.msra.mxu0 0
    %72 = vmatprep.subr.bf16.mxu0 0
    %73 = vmatpush1.bf16.msra.mxu0 0
    %74 = vmatprep.subr.bf16.mxu0 0
    %75 = vmatpush1.bf16.msra.mxu0 0
    %76 = vmatprep.subr.bf16.mxu0 0
    %77 = vmatpush1.bf16.msra.mxu0 0
    %78 = vmatprep.subr.bf16.mxu0 0
    %79 = vmatpush1.bf16.msra.mxu0 0
    %80 = vmatprep.subr.bf16.mxu0 0
    %81 = vmatpush1.bf16.msra.mxu0 0
    %82 = vmatprep.subr.bf16.mxu0 0
    %83 = vmatpush1.bf16.msra.mxu0 0
    %84 = vmatprep.subr.bf16.mxu0 0
    %85 = vmatpush1.bf16.msra.mxu0 0
    %86 = vmatprep.subr.bf16.mxu0 0
    %87 = vmatpush1.bf16.msra.mxu0 0
    %88 = vmatprep.subr.bf16.mxu0 0
    %89 = vmatpush1.bf16.msra.mxu0 0
    %90 = vmatprep.mubr.bf16.mxu0 0
    %91 = vmatmul.mubr.bf16.gmra.mrb[0].mxu0 %v52
    %v92 = vpop.f32.mrb[0].mxu0
    %v93 = vadd.f32 %v44, %v92
    %v94 = vpop.f32.mrb[0].mxu0
    %v95 = vpop.f32.mrb[0].mxu0
    %v96 = vpop.f32.mrb[0].mxu0
    %97 = vdwg.mxu0
    %v98 = vmax.f32 %v93, 0.0
    %v99 = vpack.c.bf16 %v98, %v98
    %v100 = vld [vmem:[%s2] sm:$0xf]
    %v101 = vld [vmem:[%s2 + $0x4] sm:$0xf]
    %v102 = vld [vmem:[%s2 + $0x8] sm:$0xf]
    %v103 = vld [vmem:[%s2 + $0xc] sm:$0xf]
    %v104 = vld [vmem:[%s2 + $0x10] sm:$0xf]
    %v105 = vld [vmem:[%s2 + $0x14] sm:$0xf]
    %v106 = vld [vmem:[%s2 + $0x18] sm:$0xf]
    %v107 = vld [vmem:[%s2 + $0x1c] sm:$0xf]
    %v108 = vld [vmem:[%s2 + $0x20] sm:$0xf]
    %v109 = vld [vmem:[%s2 + $0x24] sm:$0xf]
    %v110 = vld [vmem:[%s2 + $0x28] sm:$0xf]
    %v111 = vld [vmem:[%s2 + $0x2c] sm:$0xf]
    %v112 = vld [vmem:[%s2 + $0x30] sm:$0xf]
    %v113 = vld [vmem:[%s2 + $0x34] sm:$0xf]
    %v114 = vld [vmem:[%s2 + $0x38] sm:$0xf]
    %v115 = vld [vmem:[%s2 + $0x3c] sm:$0xf]
    %v116 = vlaneseq
    %v117 = vshrl.u32 %v116, 7
    %v118 = vsub.s32 0, %v117
    %v119 = vrot.slane %v35, %v118
    %v136 = vunpack.c.l.b16 %v100
    %v137 = vunpack.c.l.b16 %v101
    %v138 = vunpack.c.l.b16 %v102
    %v139 = vunpack.c.l.b16 %v103
    %v140 = vunpack.c.l.b16 %v104
    %v141 = vunpack.c.l.b16 %v105
    %v142 = vunpack.c.l.b16 %v106
    %v143 = vunpack.c.l.b16 %v107
    %v144 = vunpack.c.l.b16 %v108
    %v145 = vunpack.c.l.b16 %v109
    %v146 = vunpack.c.l.b16 %v110
    %v147 = vunpack.c.l.b16 %v111
    %v148 = vunpack.c.l.b16 %v112
    %v149 = vunpack.c.l.b16 %v113
    %v150 = vunpack.c.l.b16 %v114
    %v151 = vunpack.c.l.b16 %v115
    %v152 = vpack.c.b16 %v137, %v136
    %v153 = vpack.c.b16 %v139, %v138
    %v154 = vpack.c.b16 %v141, %v140
    %v155 = vpack.c.b16 %v143, %v142
    %v156 = vpack.c.b16 %v145, %v144
    %v157 = vpack.c.b16 %v147, %v146
    %v158 = vpack.c.b16 %v149, %v148
    %v159 = vpack.c.b16 %v151, %v150
    %168 = vmatprep.subr.bf16.mxu0 0
    %169 = vmatpush1.bf16.msra.mxu0 %v152
    %170 = vmatprep.subr.bf16.mxu0 0
    %171 = vmatpush1.bf16.msra.mxu0 %v153
    %172 = vmatprep.subr.bf16.mxu0 0
    %173 = vmatpush1.bf16.msra.mxu0 %v154
    %174 = vmatprep.subr.bf16.mxu0 0
    %175 = vmatpush1.bf16.msra.mxu0 %v155
    %176 = vmatprep.subr.bf16.mxu0 0
    %177 = vmatpush1.bf16.msra.mxu0 %v156
    %178 = vmatprep.subr.bf16.mxu0 0
    %179 = vmatpush1.bf16.msra.mxu0 %v157
    %180 = vmatprep.subr.bf16.mxu0 0
    %181 = vmatpush1.bf16.msra.mxu0 %v158
    %182 = vmatprep.subr.bf16.mxu0 0
    %183 = vmatpush1.bf16.msra.mxu0 %v159
    %184 = vmatprep.subr.bf16.mxu0 0
    %185 = vmatpush1.bf16.msra.mxu0 0
    %186 = vmatprep.subr.bf16.mxu0 0
    %187 = vmatpush1.bf16.msra.mxu0 0
    %188 = vmatprep.subr.bf16.mxu0 0
    %189 = vmatpush1.bf16.msra.mxu0 0
    %190 = vmatprep.subr.bf16.mxu0 0
    %191 = vmatpush1.bf16.msra.mxu0 0
    %192 = vmatprep.subr.bf16.mxu0 0
    %193 = vmatpush1.bf16.msra.mxu0 0
    %194 = vmatprep.subr.bf16.mxu0 0
    %195 = vmatpush1.bf16.msra.mxu0 0
    %196 = vmatprep.subr.bf16.mxu0 0
    %197 = vmatpush1.bf16.msra.mxu0 0
    %198 = vmatprep.subr.bf16.mxu0 0
    %199 = vmatpush1.bf16.msra.mxu0 0
    %200 = vmatprep.mubr.bf16.mxu0 0
    %201 = vmatmul.mubr.bf16.gmra.mrb[0].mxu0 %v99
    %v202 = vpop.f32.mrb[0].mxu0
    %v203 = vadd.f32 %v119, %v202
    %v204 = vpop.f32.mrb[0].mxu0
    %v205 = vpop.f32.mrb[0].mxu0
    %v206 = vpop.f32.mrb[0].mxu0
    %207 = vdwg.mxu0
    %v208 = vmax.f32 %v203, 0.0
    %v209 = vpack.c.bf16 %v208, %v208
    %v210 = vld [vmem:[%s3] sm:$0xf]
    %v211 = vld [vmem:[%s3 + $0x4] sm:$0xf]
    %v212 = vld [vmem:[%s3 + $0x8] sm:$0xf]
    %v213 = vld [vmem:[%s3 + $0xc] sm:$0xf]
    %v214 = vld [vmem:[%s3 + $0x10] sm:$0xf]
    %v215 = vld [vmem:[%s3 + $0x14] sm:$0xf]
    %v216 = vld [vmem:[%s3 + $0x18] sm:$0xf]
    %v217 = vld [vmem:[%s3 + $0x1c] sm:$0xf]
    %v218 = vld [vmem:[%s3 + $0x20] sm:$0xf]
    %v219 = vld [vmem:[%s3 + $0x24] sm:$0xf]
    %v220 = vld [vmem:[%s3 + $0x28] sm:$0xf]
    %v221 = vld [vmem:[%s3 + $0x2c] sm:$0xf]
    %v222 = vld [vmem:[%s3 + $0x30] sm:$0xf]
    %v223 = vld [vmem:[%s3 + $0x34] sm:$0xf]
    %v224 = vld [vmem:[%s3 + $0x38] sm:$0xf]
    %v225 = vld [vmem:[%s3 + $0x3c] sm:$0xf]
    %v226 = vlaneseq
    %v227 = vshrl.u32 %v226, 7
    %v228 = vsub.s32 0, %v227
    %v229 = vrot.slane %v36, %v228
    %v246 = vunpack.c.l.b16 %v210
    %v247 = vunpack.c.l.b16 %v211
    %v248 = vunpack.c.l.b16 %v212
    %v249 = vunpack.c.l.b16 %v213
    %v250 = vunpack.c.l.b16 %v214
    %v251 = vunpack.c.l.b16 %v215
    %v252 = vunpack.c.l.b16 %v216
    %v253 = vunpack.c.l.b16 %v217
    %v254 = vunpack.c.l.b16 %v218
    %v255 = vunpack.c.l.b16 %v219
    %v256 = vunpack.c.l.b16 %v220
    %v257 = vunpack.c.l.b16 %v221
    %v258 = vunpack.c.l.b16 %v222
    %v259 = vunpack.c.l.b16 %v223
    %v260 = vunpack.c.l.b16 %v224
    %v261 = vunpack.c.l.b16 %v225
    %v262 = vpack.c.b16 %v247, %v246
    %v263 = vpack.c.b16 %v249, %v248
    %v264 = vpack.c.b16 %v251, %v250
    %v265 = vpack.c.b16 %v253, %v252
    %v266 = vpack.c.b16 %v255, %v254
    %v267 = vpack.c.b16 %v257, %v256
    %v268 = vpack.c.b16 %v259, %v258
    %v269 = vpack.c.b16 %v261, %v260
    %278 = vmatprep.subr.bf16.mxu0 0
    %279 = vmatpush1.bf16.msra.mxu0 %v262
    %280 = vmatprep.subr.bf16.mxu0 0
    %281 = vmatpush1.bf16.msra.mxu0 %v263
    %282 = vmatprep.subr.bf16.mxu0 0
    %283 = vmatpush1.bf16.msra.mxu0 %v264
    %284 = vmatprep.subr.bf16.mxu0 0
    %285 = vmatpush1.bf16.msra.mxu0 %v265
    %286 = vmatprep.subr.bf16.mxu0 0
    %287 = vmatpush1.bf16.msra.mxu0 %v266
    %288 = vmatprep.subr.bf16.mxu0 0
    %289 = vmatpush1.bf16.msra.mxu0 %v267
    %290 = vmatprep.subr.bf16.mxu0 0
    %291 = vmatpush1.bf16.msra.mxu0 %v268
    %292 = vmatprep.subr.bf16.mxu0 0
    %293 = vmatpush1.bf16.msra.mxu0 %v269
    %294 = vmatprep.subr.bf16.mxu0 0
    %295 = vmatpush1.bf16.msra.mxu0 0
    %296 = vmatprep.subr.bf16.mxu0 0
    %297 = vmatpush1.bf16.msra.mxu0 0
    %298 = vmatprep.subr.bf16.mxu0 0
    %299 = vmatpush1.bf16.msra.mxu0 0
    %300 = vmatprep.subr.bf16.mxu0 0
    %301 = vmatpush1.bf16.msra.mxu0 0
    %302 = vmatprep.subr.bf16.mxu0 0
    %303 = vmatpush1.bf16.msra.mxu0 0
    %304 = vmatprep.subr.bf16.mxu0 0
    %305 = vmatpush1.bf16.msra.mxu0 0
    %306 = vmatprep.subr.bf16.mxu0 0
    %307 = vmatpush1.bf16.msra.mxu0 0
    %308 = vmatprep.subr.bf16.mxu0 0
    %309 = vmatpush1.bf16.msra.mxu0 0
    %310 = vmatprep.mubr.bf16.mxu0 0
    %311 = vmatmul.mubr.bf16.gmra.mrb[0].mxu0 %v209
    %v312 = vpop.f32.mrb[0].mxu0
    %v313 = vadd.f32 %v229, %v312
    %v314 = vpop.f32.mrb[0].mxu0
    %v315 = vpop.f32.mrb[0].mxu0
    %v316 = vpop.f32.mrb[0].mxu0
    %317 = vdwg.mxu0
    %vm318 = vcmask 9216
    %319 = vst.msk [vmem:[#allocation5] sm:$0x3] %vm318, %v313
    // Predicated region
    $region26: #{tpu_custom_call.1} parent=1 // pred_check
      _
    $region27: #{tpu_custom_call.1} parent=1 // pred_check_branch
      %321 = sbr.rel (0) target = $region29
    $region28: #{tpu_custom_call.1} parent=1 // pred_region
      %s323 = ssub.s32 32, 32
      %324 = vsyncadd [#allocation4], %s323
      %s326 = sshll.u32 [#allocation5], 4
      %s327 = int_to_ptr.vmem [resolvable:$true] %s326
      %329 = dma.vmem_to_hbm [thread:$0]  %s327, 32, %s5, [#allocation4]
    $region29: #{tpu_custom_call.1} parent=1 // pred_fallthru
      _
    // Predicated region
    $region30: #{tpu_custom_call.1} parent=1 // pred_check
      _
    $region31: #{tpu_custom_call.1} parent=1 // pred_check_branch
      %331 = sbr.rel (0) target = $region33
    $region32: #{tpu_custom_call.1} parent=1 // pred_region
      %332 = dma.done [#allocation4], 32
    $region33: #{tpu_custom_call.1} parent=1 // pred_fallthru
      _
    %333 = vsyncpa [#allocation3], 1
    %334 = vsyncpa [#allocation4], 1

</llo_original>
